<compile_context>
chip_gen: v5e
topology: v5e:2x2
jax: 0.10.0
libtpu: 0.0.40
codegen_flags: <defaults>
</compile_context>

<pallas_src>
import math

import jax
import jax.numpy as jnp
from jax.experimental import pallas as pl
from jax.experimental.pallas import tpu as pltpu

# ---------------- model hyper-parameters (synthetic inner model) -------------
C_EVENT = 8        # event time-bin channels per camera
F_HID = 32         # hidden feature channels (1x1 conv)
K_DET = 9          # objdet head channels
K_FAC = 6          # facet head channels
K_OUT = K_DET + 2 * K_FAC + 3   # 24 packed output channels
MAX_TILE_PIX = 8192             # max pixels per grid step (lane axis)

# packed output channel layout
#   [0:9)   objdet
#   [9:15)  facets (left)
#   [15:21) facets (right)
#   [21]    concentrate left
#   [22]    concentrate right
#   [23]    disparity


# ------------------------------- Pallas kernel -------------------------------
def _stereo_heads_kernel(
    le_ref, re_ref,                       # (1, C_EVENT, TILE) event tiles
    w1l_ref, b1l_ref, w1r_ref, b1r_ref,   # layer-1 slabs (33, 8) / (33, 1)
    w2l_ref, b2l_ref, w2r_ref, b2r_ref,   # layer-2 slabs (16, 32)/(7, 32)
    out_ref,                              # (1, K_OUT, TILE) packed output
):
    le = le_ref[0]                        # (C_EVENT, TILE) fp32
    re = re_ref[0]

    # layer 1: rows 0:F_HID = backbone features, row F_HID = concentrate head
    h_l = jnp.dot(w1l_ref[...], le, preferred_element_type=jnp.float32) + b1l_ref[...]
    h_r = jnp.dot(w1r_ref[...], re, preferred_element_type=jnp.float32) + b1r_ref[...]

    fl = jnp.maximum(h_l[0:F_HID, :], 0.0)        # (F_HID, TILE)
    fr = jnp.maximum(h_r[0:F_HID, :], 0.0)

    # layer 2 (left):  rows 0:9 det, 9:15 fac, 15 disp_left
    # layer 2 (right): rows 0:6 facr, 6 disp_right
    y_l = jnp.dot(w2l_ref[...], fl, preferred_element_type=jnp.float32) + b2l_ref[...]
    y_r = jnp.dot(w2r_ref[...], fr, preferred_element_type=jnp.float32) + b2r_ref[...]

    out_ref[0, 0:15, :] = y_l[0:15, :]                      # det | fac
    out_ref[0, 15:21, :] = y_r[0:6, :]                      # facr
    out_ref[0, 21:22, :] = h_l[F_HID:F_HID + 1, :]          # concentrate left
    out_ref[0, 22:23, :] = h_r[F_HID:F_HID + 1, :]          # concentrate right
    out_ref[0, 23:24, :] = y_l[15:16, :] + y_r[6:7, :]      # disparity


def _stereo_heads_pallas(left, right, packed_params, tile):
    """left/right: (B, C_EVENT, P) fp32 with P % tile == 0, tile % 128 == 0."""
    B, C, P = left.shape
    n_tiles = P // tile

    def pix_spec(c):
        return pl.BlockSpec((1, c, tile), lambda b, p: (b, 0, p))

    def w_spec(arr):
        return pl.BlockSpec(arr.shape, lambda b, p: (0, 0))

    in_specs = [pix_spec(C_EVENT), pix_spec(C_EVENT)] + [
        w_spec(a) for a in packed_params
    ]

    return pl.pallas_call(
        _stereo_heads_kernel,
        out_shape=jax.ShapeDtypeStruct((B, K_OUT, P), jnp.float32),
        grid_spec=pltpu.PrefetchScalarGridSpec(
            num_scalar_prefetch=0,
            grid=(B, n_tiles),
            in_specs=in_specs,
            out_specs=pix_spec(K_OUT),
        ),
        compiler_params=pltpu.CompilerParams(
            dimension_semantics=("parallel", "parallel"),
        ),
    )(left, right, *packed_params)


# --------------------------- parameter construction --------------------------
def make_raw_params(key):
    ks = jax.random.split(key, 12)

    def w(k, shape, scale):
        return jax.random.normal(k, shape, jnp.float32) * scale

    wcl = w(ks[0], (C_EVENT, 1), 0.3)
    bcl = jnp.zeros((1, 1), jnp.float32)
    wcr = w(ks[1], (C_EVENT, 1), 0.3)
    bcr = jnp.zeros((1, 1), jnp.float32)

    wfl = w(ks[2], (C_EVENT, F_HID), 0.2)
    bfl = jnp.full((1, F_HID), 0.05, jnp.float32)
    wfr = w(ks[3], (C_EVENT, F_HID), 0.2)
    bfr = jnp.full((1, F_HID), 0.05, jnp.float32)

    wdl = w(ks[4], (F_HID, 1), 0.1)
    wdr = w(ks[5], (F_HID, 1), 0.1)
    bd = jnp.zeros((1, 1), jnp.float32)

    wdet = w(ks[6], (F_HID, K_DET), 0.1)
    bdet = jnp.zeros((1, K_DET), jnp.float32)

    wfac = w(ks[7], (F_HID, K_FAC), 0.1)
    bfac = jnp.zeros((1, K_FAC), jnp.float32)
    wfacr = w(ks[8], (F_HID, K_FAC), 0.1)
    bfacr = jnp.zeros((1, K_FAC), jnp.float32)

    return (wcl, bcl, wcr, bcr,
            wfl, bfl, wfr, bfr,
            wdl, wdr, bd,
            wdet, bdet,
            wfac, bfac, wfacr, bfacr)


def pack_params(raw):
    """Pack 17 per-head weights into 4 transposed slabs + 4 bias columns."""
    (wcl, bcl, wcr, bcr,
     wfl, bfl, wfr, bfr,
     wdl, wdr, bd,
     wdet, bdet,
     wfac, bfac, wfacr, bfacr) = raw

    # layer 1: rows 0:F_HID features, row F_HID concentrate head
    w1l = jnp.concatenate([wfl.T, wcl.T], axis=0)          # (F_HID+1, C_EVENT)
    b1l = jnp.concatenate([bfl.T, bcl.T], axis=0)          # (F_HID+1, 1)
    w1r = jnp.concatenate([wfr.T, wcr.T], axis=0)
    b1r = jnp.concatenate([bfr.T, bcr.T], axis=0)

    # layer 2 left: rows 0:9 det, 9:15 fac, 15 disp_left (disp bias lives here)
    w2l = jnp.concatenate([wdet.T, wfac.T, wdl.T], axis=0)  # (16, F_HID)
    b2l = jnp.concatenate([bdet.T, bfac.T, bd.T], axis=0)   # (16, 1)

    # layer 2 right: rows 0:6 facr, 6 disp_right (bias 0; disp bias in b2l)
    w2r = jnp.concatenate([wfacr.T, wdr.T], axis=0)         # (7, F_HID)
    b2r = jnp.concatenate([bfacr.T, jnp.zeros((1, 1), jnp.float32)], axis=0)

    return (w1l, b1l, w1r, b1r, w2l, b2l, w2r, b2r)


# ----------------------------- forward (wrapper) -----------------------------
@jax.jit
def onnx_style_network_forward(left_event, right_event, h_cam, w_cam, packed_params):
    """Mirror of OnnxStyleNetwork.forward.

    left_event/right_event: NCHW float32 (B, C_EVENT, H, W).
    Returns the 6-tuple (objdet, facets, facets_right, concentrate_left,
    concentrate_right, disparity), each NCHW float32.
    """
    # TODO(synk): h_cam/w_cam .item() metadata is only consumed by the
    # unspecified inner model; it has no effect on the synthetic heads.
    del h_cam, w_cam

    B, C, H, W = left_event.shape
    assert C == C_EVENT
    P = H * W

    # choose a lane-dense pixel tile (multiple of 128), minimizing padding
    n_tiles = max(1, math.ceil(P / MAX_TILE_PIX))
    tile = math.ceil(math.ceil(P / n_tiles) / 128) * 128
    P_pad = tile * n_tiles

    # NCHW is already channel-major: only free reshapes, no transposes
    le = left_event.astype(jnp.float32).reshape(B, C, P)
    re = right_event.astype(jnp.float32).reshape(B, C, P)
    if P_pad != P:
        pad = ((0, 0), (0, 0), (0, P_pad - P))
        le = jnp.pad(le, pad)
        re = jnp.pad(re, pad)

    packed = _stereo_heads_pallas(le, re, packed_params, tile)   # (B, 24, P_pad)
    packed = packed[:, :, :P]

    def head(lo, hi):
        return packed[:, lo:hi, :].reshape(B, hi - lo, H, W)

    output_objdet = head(0, K_DET)
    output_facets = head(K_DET, K_DET + K_FAC)
    output_facets_right = head(K_DET + K_FAC, K_DET + 2 * K_FAC)
    output_concentrate_left = head(21, 22)
    output_concentrate_right = head(22, 23)
    output_disparity = head(23, 24)

    return (output_objdet, output_facets, output_facets_right,
            output_concentrate_left, output_concentrate_right,
            output_disparity)


# ------------------------------- reference check -----------------------------
def _reference_forward(left_event, right_event, raw_params):
    (wcl, bcl, wcr, bcr, wfl, bfl, wfr, bfr,
     wdl, wdr, bd, wdet, bdet, wfac, bfac, wfacr, bfacr) = raw_params
    B, C, H, W = left_event.shape
    le = jnp.transpose(left_event, (0, 2, 3, 1)).reshape(-1, C)
    re = jnp.transpose(right_event, (0, 2, 3, 1)).reshape(-1, C)
    conc_l = le @ wcl + bcl
    conc_r = re @ wcr + bcr
    fl = jnp.maximum(le @ wfl + bfl, 0.0)
    fr = jnp.maximum(re @ wfr + bfr, 0.0)
    disp = fl @ wdl + fr @ wdr + bd
    det = fl @ wdet + bdet
    fac = fl @ wfac + bfac
    facr = fr @ wfacr + bfacr

    def un(x):
        return jnp.transpose(x.reshape(B, H, W, -1), (0, 3, 1, 2))

    return (un(det), un(fac), un(facr), un(conc_l), un(conc_r), un(disp))


if __name__ == "__main__":
    key = jax.random.PRNGKey(0)
    k_l, k_r = jax.random.split(key)

    B, H, W = 2, 16, 16
    left_event = jax.random.normal(k_l, (B, C_EVENT, H, W), jnp.float32)
    right_event = jax.random.normal(k_r, (B, C_EVENT, H, W), jnp.float32)
    h_cam = jnp.array(H, jnp.int32)
    w_cam = jnp.array(W, jnp.int32)

    raw_params = make_raw_params(jax.random.PRNGKey(42))
    packed_params = pack_params(raw_params)

    outs = onnx_style_network_forward(
        left_event, right_event, h_cam, w_cam, packed_params
    )
    outs = jax.block_until_ready(outs)

    refs = _reference_forward(left_event, right_event, raw_params)
    for o, r in zip(outs, refs):
        assert o.shape == r.shape and o.dtype == r.dtype
        assert jnp.max(jnp.abs(o - r)) < 1e-4

    print("KERNEL_OK")
</pallas_src>

<mosaic_0001>
module attributes {stable_mosaic.version = 11 : i64} {
  func.func @_stereo_heads_kernel(%arg0: i32, %arg1: i32, %arg2: memref<1x8x256xf32, #tpu.memory_space<vmem>>, %arg3: memref<1x8x256xf32, #tpu.memory_space<vmem>>, %arg4: memref<33x8xf32, #tpu.memory_space<vmem>>, %arg5: memref<33x1xf32, #tpu.memory_space<vmem>>, %arg6: memref<33x8xf32, #tpu.memory_space<vmem>>, %arg7: memref<33x1xf32, #tpu.memory_space<vmem>>, %arg8: memref<16x32xf32, #tpu.memory_space<vmem>>, %arg9: memref<16x1xf32, #tpu.memory_space<vmem>>, %arg10: memref<7x32xf32, #tpu.memory_space<vmem>>, %arg11: memref<7x1xf32, #tpu.memory_space<vmem>>, %arg12: memref<1x24x256xf32, #tpu.memory_space<vmem>>) attributes {dimension_semantics = [#tpu.dimension_semantics<parallel>, #tpu.dimension_semantics<parallel>], iteration_bounds = array<i64: 2, 1>, scalar_prefetch = 0 : i64, scratch_operands = 0 : i64, tpu.core_type = #tpu.core_type<tc>, window_params = [{transform_indices = @transform_0, window_bounds = array<i64: 1, 8, 256>}, {transform_indices = @transform_1, window_bounds = array<i64: 1, 8, 256>}, {pipeline_mode = #tpu.pipeline_mode<synchronous>, transform_indices = @transform_2, window_bounds = array<i64: 33, 8>}, {pipeline_mode = #tpu.pipeline_mode<synchronous>, transform_indices = @transform_3, window_bounds = array<i64: 33, 1>}, {pipeline_mode = #tpu.pipeline_mode<synchronous>, transform_indices = @transform_4, window_bounds = array<i64: 33, 8>}, {pipeline_mode = #tpu.pipeline_mode<synchronous>, transform_indices = @transform_5, window_bounds = array<i64: 33, 1>}, {pipeline_mode = #tpu.pipeline_mode<synchronous>, transform_indices = @transform_6, window_bounds = array<i64: 16, 32>}, {pipeline_mode = #tpu.pipeline_mode<synchronous>, transform_indices = @transform_7, window_bounds = array<i64: 16, 1>}, {pipeline_mode = #tpu.pipeline_mode<synchronous>, transform_indices = @transform_8, window_bounds = array<i64: 7, 32>}, {pipeline_mode = #tpu.pipeline_mode<synchronous>, transform_indices = @transform_9, window_bounds = array<i64: 7, 1>}, {transform_indices = @transform_10, window_bounds = array<i64: 1, 24, 256>}]} {
    %c0 = arith.constant 0 : index
    %c0_0 = arith.constant 0 : index
    %c0_1 = arith.constant 0 : index
    %0 = vector.load %arg2[%c0, %c0_0, %c0_1] : memref<1x8x256xf32, #tpu.memory_space<vmem>>, vector<1x8x256xf32>
    %1 = vector.shape_cast %0 : vector<1x8x256xf32> to vector<8x256xf32>
    %c0_2 = arith.constant 0 : index
    %c0_3 = arith.constant 0 : index
    %c0_4 = arith.constant 0 : index
    %2 = vector.load %arg3[%c0_2, %c0_3, %c0_4] : memref<1x8x256xf32, #tpu.memory_space<vmem>>, vector<1x8x256xf32>
    %3 = vector.shape_cast %2 : vector<1x8x256xf32> to vector<8x256xf32>
    %c0_5 = arith.constant 0 : index
    %c0_6 = arith.constant 0 : index
    %4 = vector.load %arg4[%c0_5, %c0_6] : memref<33x8xf32, #tpu.memory_space<vmem>>, vector<33x8xf32>
    %cst = arith.constant dense<0.000000e+00> : vector<33x256xf32>
    %5 = tpu.matmul %4, %1, %cst {dimension_numbers = #tpu.dot_dimension_numbers<[1], [0], [0], [1], [0, 0, 1, 1], [], []>} : vector<33x8xf32>, vector<8x256xf32>, vector<33x256xf32> -> vector<33x256xf32>
    %c0_7 = arith.constant 0 : index
    %c0_8 = arith.constant 0 : index
    %6 = vector.load %arg5[%c0_7, %c0_8] : memref<33x1xf32, #tpu.memory_space<vmem>>, vector<33x1xf32>
    %7 = vector.broadcast %6 : vector<33x1xf32> to vector<33x256xf32>
    %8 = arith.addf %5, %7 : vector<33x256xf32>
    %c0_9 = arith.constant 0 : index
    %c0_10 = arith.constant 0 : index
    %9 = vector.load %arg6[%c0_9, %c0_10] : memref<33x8xf32, #tpu.memory_space<vmem>>, vector<33x8xf32>
    %cst_11 = arith.constant dense<0.000000e+00> : vector<33x256xf32>
    %10 = tpu.matmul %9, %3, %cst_11 {dimension_numbers = #tpu.dot_dimension_numbers<[1], [0], [0], [1], [0, 0, 1, 1], [], []>} : vector<33x8xf32>, vector<8x256xf32>, vector<33x256xf32> -> vector<33x256xf32>
    %c0_12 = arith.constant 0 : index
    %c0_13 = arith.constant 0 : index
    %11 = vector.load %arg7[%c0_12, %c0_13] : memref<33x1xf32, #tpu.memory_space<vmem>>, vector<33x1xf32>
    %12 = vector.broadcast %11 : vector<33x1xf32> to vector<33x256xf32>
    %13 = arith.addf %10, %12 : vector<33x256xf32>
    %14 = vector.extract_strided_slice %8 {offsets = [0, 0], sizes = [32, 256], strides = [1, 1]} : vector<33x256xf32> to vector<32x256xf32>
    %cst_14 = arith.constant 0.000000e+00 : f32
    %15 = vector.broadcast %cst_14 : f32 to vector<32x256xf32>
    %16 = arith.maximumf %14, %15 : vector<32x256xf32>
    %17 = vector.extract_strided_slice %13 {offsets = [0, 0], sizes = [32, 256], strides = [1, 1]} : vector<33x256xf32> to vector<32x256xf32>
    %cst_15 = arith.constant 0.000000e+00 : f32
    %18 = vector.broadcast %cst_15 : f32 to vector<32x256xf32>
    %19 = arith.maximumf %17, %18 : vector<32x256xf32>
    %c0_16 = arith.constant 0 : index
    %c0_17 = arith.constant 0 : index
    %20 = vector.load %arg8[%c0_16, %c0_17] : memref<16x32xf32, #tpu.memory_space<vmem>>, vector<16x32xf32>
    %cst_18 = arith.constant dense<0.000000e+00> : vector<16x256xf32>
    %21 = tpu.matmul %20, %16, %cst_18 {dimension_numbers = #tpu.dot_dimension_numbers<[1], [0], [0], [1], [0, 0, 1, 1], [], []>} : vector<16x32xf32>, vector<32x256xf32>, vector<16x256xf32> -> vector<16x256xf32>
    %c0_19 = arith.constant 0 : index
    %c0_20 = arith.constant 0 : index
    %22 = vector.load %arg9[%c0_19, %c0_20] : memref<16x1xf32, #tpu.memory_space<vmem>>, vector<16x1xf32>
    %23 = vector.broadcast %22 : vector<16x1xf32> to vector<16x256xf32>
    %24 = arith.addf %21, %23 : vector<16x256xf32>
    %c0_21 = arith.constant 0 : index
    %c0_22 = arith.constant 0 : index
    %25 = vector.load %arg10[%c0_21, %c0_22] : memref<7x32xf32, #tpu.memory_space<vmem>>, vector<7x32xf32>
    %cst_23 = arith.constant dense<0.000000e+00> : vector<7x256xf32>
    %26 = tpu.matmul %25, %19, %cst_23 {dimension_numbers = #tpu.dot_dimension_numbers<[1], [0], [0], [1], [0, 0, 1, 1], [], []>} : vector<7x32xf32>, vector<32x256xf32>, vector<7x256xf32> -> vector<7x256xf32>
    %c0_24 = arith.constant 0 : index
    %c0_25 = arith.constant 0 : index
    %27 = vector.load %arg11[%c0_24, %c0_25] : memref<7x1xf32, #tpu.memory_space<vmem>>, vector<7x1xf32>
    %28 = vector.broadcast %27 : vector<7x1xf32> to vector<7x256xf32>
    %29 = arith.addf %26, %28 : vector<7x256xf32>
    %30 = vector.extract_strided_slice %24 {offsets = [0, 0], sizes = [15, 256], strides = [1, 1]} : vector<16x256xf32> to vector<15x256xf32>
    %c0_26 = arith.constant 0 : index
    %c0_27 = arith.constant 0 : index
    %c0_28 = arith.constant 0 : index
    %31 = vector.load %arg12[%c0_26, %c0_27, %c0_28] : memref<1x24x256xf32, #tpu.memory_space<vmem>>, vector<1x15x256xf32>
    %32 = vector.shape_cast %31 : vector<1x15x256xf32> to vector<15x256xf32>
    %33 = vector.shape_cast %30 : vector<15x256xf32> to vector<1x15x256xf32>
    tpu.vector_store %arg12[%c0_26, %c0_27, %c0_28], %33 {strides = array<i32>} : memref<1x24x256xf32, #tpu.memory_space<vmem>>, vector<1x15x256xf32>,
    %34 = vector.extract_strided_slice %29 {offsets = [0, 0], sizes = [6, 256], strides = [1, 1]} : vector<7x256xf32> to vector<6x256xf32>
    %c0_29 = arith.constant 0 : index
    %c15 = arith.constant 15 : index
    %c0_30 = arith.constant 0 : index
    %35 = vector.load %arg12[%c0_29, %c15, %c0_30] : memref<1x24x256xf32, #tpu.memory_space<vmem>>, vector<1x6x256xf32>
    %36 = vector.shape_cast %35 : vector<1x6x256xf32> to vector<6x256xf32>
    %37 = vector.shape_cast %34 : vector<6x256xf32> to vector<1x6x256xf32>
    tpu.vector_store %arg12[%c0_29, %c15, %c0_30], %37 {strides = array<i32>} : memref<1x24x256xf32, #tpu.memory_space<vmem>>, vector<1x6x256xf32>,
    %38 = vector.extract_strided_slice %8 {offsets = [32, 0], sizes = [1, 256], strides = [1, 1]} : vector<33x256xf32> to vector<1x256xf32>
    %c0_31 = arith.constant 0 : index
    %c21 = arith.constant 21 : index
    %c0_32 = arith.constant 0 : index
    %39 = vector.load %arg12[%c0_31, %c21, %c0_32] : memref<1x24x256xf32, #tpu.memory_space<vmem>>, vector<1x1x256xf32>
    %40 = vector.shape_cast %39 : vector<1x1x256xf32> to vector<1x256xf32>
    %41 = vector.shape_cast %38 : vector<1x256xf32> to vector<1x1x256xf32>
    tpu.vector_store %arg12[%c0_31, %c21, %c0_32], %41 {strides = array<i32>} : memref<1x24x256xf32, #tpu.memory_space<vmem>>, vector<1x1x256xf32>,
    %42 = vector.extract_strided_slice %13 {offsets = [32, 0], sizes = [1, 256], strides = [1, 1]} : vector<33x256xf32> to vector<1x256xf32>
    %c0_33 = arith.constant 0 : index
    %c22 = arith.constant 22 : index
    %c0_34 = arith.constant 0 : index
    %43 = vector.load %arg12[%c0_33, %c22, %c0_34] : memref<1x24x256xf32, #tpu.memory_space<vmem>>, vector<1x1x256xf32>
    %44 = vector.shape_cast %43 : vector<1x1x256xf32> to vector<1x256xf32>
    %45 = vector.shape_cast %42 : vector<1x256xf32> to vector<1x1x256xf32>
    tpu.vector_store %arg12[%c0_33, %c22, %c0_34], %45 {strides = array<i32>} : memref<1x24x256xf32, #tpu.memory_space<vmem>>, vector<1x1x256xf32>,
    %46 = vector.extract_strided_slice %24 {offsets = [15, 0], sizes = [1, 256], strides = [1, 1]} : vector<16x256xf32> to vector<1x256xf32>
    %47 = vector.extract_strided_slice %29 {offsets = [6, 0], sizes = [1, 256], strides = [1, 1]} : vector<7x256xf32> to vector<1x256xf32>
    %48 = arith.addf %46, %47 : vector<1x256xf32>
    %c0_35 = arith.constant 0 : index
    %c23 = arith.constant 23 : index
    %c0_36 = arith.constant 0 : index
    %49 = vector.load %arg12[%c0_35, %c23, %c0_36] : memref<1x24x256xf32, #tpu.memory_space<vmem>>, vector<1x1x256xf32>
    %50 = vector.shape_cast %49 : vector<1x1x256xf32> to vector<1x256xf32>
    %51 = vector.shape_cast %48 : vector<1x256xf32> to vector<1x1x256xf32>
    tpu.vector_store %arg12[%c0_35, %c23, %c0_36], %51 {strides = array<i32>} : memref<1x24x256xf32, #tpu.memory_space<vmem>>, vector<1x1x256xf32>,
    return
  }
  func.func @transform_0(%arg0: i32, %arg1: i32) -> (i32, i32, i32) {
    %c0_i32 = arith.constant 0 : i32
    %c0_i32_0 = arith.constant 0 : i32
    return %arg0, %c0_i32, %arg1 : i32, i32, i32
  }
  func.func @transform_1(%arg0: i32, %arg1: i32) -> (i32, i32, i32) {
    %c0_i32 = arith.constant 0 : i32
    %c0_i32_0 = arith.constant 0 : i32
    return %arg0, %c0_i32, %arg1 : i32, i32, i32
  }
  func.func @transform_2(%arg0: i32, %arg1: i32) -> (i32, i32) {
    %c0_i32 = arith.constant 0 : i32
    %c0_i32_0 = arith.constant 0 : i32
    %c0_i32_1 = arith.constant 0 : i32
    return %c0_i32, %c0_i32_0 : i32, i32
  }
  func.func @transform_3(%arg0: i32, %arg1: i32) -> (i32, i32) {
    %c0_i32 = arith.constant 0 : i32
    %c0_i32_0 = arith.constant 0 : i32
    %c0_i32_1 = arith.constant 0 : i32
    return %c0_i32, %c0_i32_0 : i32, i32
  }
  func.func @transform_4(%arg0: i32, %arg1: i32) -> (i32, i32) {
    %c0_i32 = arith.constant 0 : i32
    %c0_i32_0 = arith.constant 0 : i32
    %c0_i32_1 = arith.constant 0 : i32
    return %c0_i32, %c0_i32_0 : i32, i32
  }
  func.func @transform_5(%arg0: i32, %arg1: i32) -> (i32, i32) {
    %c0_i32 = arith.constant 0 : i32
    %c0_i32_0 = arith.constant 0 : i32
    %c0_i32_1 = arith.constant 0 : i32
    return %c0_i32, %c0_i32_0 : i32, i32
  }
  func.func @transform_6(%arg0: i32, %arg1: i32) -> (i32, i32) {
    %c0_i32 = arith.constant 0 : i32
    %c0_i32_0 = arith.constant 0 : i32
    %c0_i32_1 = arith.constant 0 : i32
    return %c0_i32, %c0_i32_0 : i32, i32
  }
  func.func @transform_7(%arg0: i32, %arg1: i32) -> (i32, i32) {
    %c0_i32 = arith.constant 0 : i32
    %c0_i32_0 = arith.constant 0 : i32
    %c0_i32_1 = arith.constant 0 : i32
    return %c0_i32, %c0_i32_0 : i32, i32
  }
  func.func @transform_8(%arg0: i32, %arg1: i32) -> (i32, i32) {
    %c0_i32 = arith.constant 0 : i32
    %c0_i32_0 = arith.constant 0 : i32
    %c0_i32_1 = arith.constant 0 : i32
    return %c0_i32, %c0_i32_0 : i32, i32
  }
  func.func @transform_9(%arg0: i32, %arg1: i32) -> (i32, i32) {
    %c0_i32 = arith.constant 0 : i32
    %c0_i32_0 = arith.constant 0 : i32
    %c0_i32_1 = arith.constant 0 : i32
    return %c0_i32, %c0_i32_0 : i32, i32
  }
  func.func @transform_10(%arg0: i32, %arg1: i32) -> (i32, i32, i32) {
    %c0_i32 = arith.constant 0 : i32
    %c0_i32_0 = arith.constant 0 : i32
    return %arg0, %c0_i32, %arg1 : i32, i32, i32
  }
}

</mosaic_0001>

<llo_original>
// kernel: onnx_style_network_forward.1
$region0: #{onnx_style_network_forward.1}
  #allocation0 [shape = 'u32[]', space=smem, size = 0x4, offset = 0x4, fixed_abs, tag = 'smem constant byte address 0x4 - core index']
  #allocation1 [shape = 'u32[72,128]{1,0:T(1,128)}', space=vmem, size = 0x9000, scoped, tag = 'internal scratch']
  %s0 = inlined_call_operand.vmem [shape: f32[2,8,256], index: 0, kind: input, shape index: {}]
  %s1 = inlined_call_operand.vmem [shape: f32[2,8,256], index: 1, kind: input, shape index: {}]
  %s2 = inlined_call_operand.vmem [shape: f32[33,8], index: 2, kind: input, shape index: {}]
  %s3 = inlined_call_operand.vmem [shape: f32[33,1], index: 3, kind: input, shape index: {}]
  %s4 = inlined_call_operand.vmem [shape: f32[33,8], index: 4, kind: input, shape index: {}]
  %s5 = inlined_call_operand.vmem [shape: f32[33,1], index: 5, kind: input, shape index: {}]
  %s6 = inlined_call_operand.vmem [shape: f32[16,32], index: 6, kind: input, shape index: {}]
  %s7 = inlined_call_operand.vmem [shape: f32[16,1], index: 7, kind: input, shape index: {}]
  %s8 = inlined_call_operand.vmem [shape: f32[7,32], index: 8, kind: input, shape index: {}]
  %s9 = inlined_call_operand.vmem [shape: f32[7,1], index: 9, kind: input, shape index: {}]
  %s10 = inlined_call_operand.vmem [shape: f32[2,24,256], index: 10, kind: output, shape index: {}]
  %s11 = sld [smem:[#allocation0]]
  $region73: #{onnx_style_network_forward.1} parent=0
    _
  %s13 = ssub.s32 1, %s11
  %s14 = scalar_select 0, %s13, %s11
  loop: start=0, step=1, limit=4
  $region2: #{onnx_style_network_forward.1} parent=0 // loop_pre_header
    _
  $region3: #{onnx_style_network_forward.1} parent=0 // loop_header
    %s16 = sphi 0, %s20
    %p17 = scmp.ge.s32.totalorder %s16, 4
    %s23 = sphi 0, %s35
    %s24 = sphi 0, %s31
    %s25 = sphi 0, %s23
    %s26 = sphi 0, %s24
    %s27 = sphi 0, %s25
    %s28 = sphi 0, %s26
    %s40 = sphi 0, %s42
    %s43 = sphi 0, %s40
    %s44 = sphi 0, %s43
    %s60 = sphi 0, %s44
    %s68 = sphi 0, %s70
    %s71 = sphi 0, %s68
    %s72 = sphi 0, %s71
    %s88 = sphi 0, %s72
    %s92 = sphi 0, %s92
    %s94 = sphi 0, %s92
    %s95 = sphi 0, %s94
    %s109 = sphi 0, %s95
    %s113 = sphi 0, %s113
    %s115 = sphi 0, %s113
    %s116 = sphi 0, %s115
    %s130 = sphi 0, %s116
    %s134 = sphi 0, %s134
    %s136 = sphi 0, %s134
    %s137 = sphi 0, %s136
    %s151 = sphi 0, %s137
    %s155 = sphi 0, %s155
    %s157 = sphi 0, %s155
    %s158 = sphi 0, %s157
    %s172 = sphi 0, %s158
    %s176 = sphi 0, %s176
    %s178 = sphi 0, %s176
    %s179 = sphi 0, %s178
    %s193 = sphi 0, %s179
    %s197 = sphi 0, %s197
    %s199 = sphi 0, %s197
    %s200 = sphi 0, %s199
    %s214 = sphi 0, %s200
    %s218 = sphi 0, %s218
    %s220 = sphi 0, %s218
    %s221 = sphi 0, %s220
    %s235 = sphi 0, %s221
    %s239 = sphi 0, %s239
    %s241 = sphi 0, %s239
    %s242 = sphi 0, %s241
    %s256 = sphi 0, %s242
    %s264 = sphi 0, %s266
    %s267 = sphi 0, %s264
    %s268 = sphi 0, %s267
    %s284 = sphi 0, %s268
  $region4: #{onnx_style_network_forward.1} parent=0 // loop_header_branch
    %19 = sbr.rel (%p17) target = $region8
  $region5: #{onnx_style_network_forward.1} parent=0 // loop_body
    %s21 = ssub.s32 %s16, 1
    %s22 = ssub.s32 %s16, 2
    %s29 = sadd.s32 1, %s24
    %p30 = scmp.ge.s32.totalorder %s29, 1
    %s31 = scalar_select %p30, 0, %s29
    %s32 = sadd.s32 1, %s23
    %s33 = scalar_select %p30, %s32, %s23
    %p34 = scmp.ge.s32.totalorder %s33, 2
    %s35 = scalar_select %p34, 0, %s33
    %s36 = ssub.s32 %s23, %s35
    %s37 = ssub.s32 %s24, %s31
    %s38 = sor.u32 %s36, %s37
    %p39 = scmp.eq.s32.totalorder %s38, 0
    %s41 = sadd.s32 %s40, 1
    %s42 = scalar_select %p39, %s40, %s41
    %p45 = pneg %p39
    %p46 = scmp.eq.s32.totalorder %s16, 1
    %p47 = por %p45, %p46
    %p48 = scmp.ne.s32.totalorder %s40, %s43
    %p49 = scmp.eq.s32.totalorder %s16, 0
    %p50 = por %p48, %p49
    %p51 = scmp.ne.s32.totalorder %s40, %s43
    %p52 = scmp.eq.s32.totalorder %s21, 1
    %p53 = por %p51, %p52
    %p54 = scmp.ne.s32.totalorder %s43, %s44
    %p55 = scmp.eq.s32.totalorder %s21, 0
    %p56 = por %p54, %p55
    %p57 = scmp.ne.s32.totalorder %s43, %s44
    %p58 = scmp.eq.s32.totalorder %s22, 1
    %p59 = por %p57, %p58
    %p61 = scmp.ne.s32.totalorder %s44, %s60
    %p62 = scmp.eq.s32.totalorder %s22, 0
    %p63 = por %p61, %p62
    %s64 = ssub.s32 %s23, %s35
    %s65 = ssub.s32 %s24, %s31
    %s66 = sor.u32 %s64, %s65
    %p67 = scmp.eq.s32.totalorder %s66, 0
    %s69 = sadd.s32 %s68, 1
    %s70 = scalar_select %p67, %s68, %s69
    %p73 = pneg %p67
    %p74 = scmp.eq.s32.totalorder %s16, 1
    %p75 = por %p73, %p74
    %p76 = scmp.ne.s32.totalorder %s68, %s71
    %p77 = scmp.eq.s32.totalorder %s16, 0
    %p78 = por %p76, %p77
    %p79 = scmp.ne.s32.totalorder %s68, %s71
    %p80 = scmp.eq.s32.totalorder %s21, 1
    %p81 = por %p79, %p80
    %p82 = scmp.ne.s32.totalorder %s71, %s72
    %p83 = scmp.eq.s32.totalorder %s21, 0
    %p84 = por %p82, %p83
    %p85 = scmp.ne.s32.totalorder %s71, %s72
    %p86 = scmp.eq.s32.totalorder %s22, 1
    %p87 = por %p85, %p86
    %p89 = scmp.ne.s32.totalorder %s72, %s88
    %p90 = scmp.eq.s32.totalorder %s22, 0
    %p91 = por %p89, %p90
    %s93 = sadd.s32 %s92, 1
    %p96 = scmp.eq.s32.totalorder %s16, 1
    %p97 = scmp.ne.s32.totalorder %s92, %s94
    %p98 = scmp.eq.s32.totalorder %s16, 0
    %p99 = por %p97, %p98
    %p100 = scmp.ne.s32.totalorder %s92, %s94
    %p101 = scmp.eq.s32.totalorder %s21, 1
    %p102 = por %p100, %p101
    %p103 = scmp.ne.s32.totalorder %s94, %s95
    %p104 = scmp.eq.s32.totalorder %s21, 0
    %p105 = por %p103, %p104
    %p106 = scmp.ne.s32.totalorder %s94, %s95
    %p107 = scmp.eq.s32.totalorder %s22, 1
    %p108 = por %p106, %p107
    %p110 = scmp.ne.s32.totalorder %s95, %s109
    %p111 = scmp.eq.s32.totalorder %s22, 0
    %p112 = por %p110, %p111
    %s114 = sadd.s32 %s113, 1
    %p117 = scmp.eq.s32.totalorder %s16, 1
    %p118 = scmp.ne.s32.totalorder %s113, %s115
    %p119 = scmp.eq.s32.totalorder %s16, 0
    %p120 = por %p118, %p119
    %p121 = scmp.ne.s32.totalorder %s113, %s115
    %p122 = scmp.eq.s32.totalorder %s21, 1
    %p123 = por %p121, %p122
    %p124 = scmp.ne.s32.totalorder %s115, %s116
    %p125 = scmp.eq.s32.totalorder %s21, 0
    %p126 = por %p124, %p125
    %p127 = scmp.ne.s32.totalorder %s115, %s116
    %p128 = scmp.eq.s32.totalorder %s22, 1
    %p129 = por %p127, %p128
    %p131 = scmp.ne.s32.totalorder %s116, %s130
    %p132 = scmp.eq.s32.totalorder %s22, 0
    %p133 = por %p131, %p132
    %s135 = sadd.s32 %s134, 1
    %p138 = scmp.eq.s32.totalorder %s16, 1
    %p139 = scmp.ne.s32.totalorder %s134, %s136
    %p140 = scmp.eq.s32.totalorder %s16, 0
    %p141 = por %p139, %p140
    %p142 = scmp.ne.s32.totalorder %s134, %s136
    %p143 = scmp.eq.s32.totalorder %s21, 1
    %p144 = por %p142, %p143
    %p145 = scmp.ne.s32.totalorder %s136, %s137
    %p146 = scmp.eq.s32.totalorder %s21, 0
    %p147 = por %p145, %p146
    %p148 = scmp.ne.s32.totalorder %s136, %s137
    %p149 = scmp.eq.s32.totalorder %s22, 1
    %p150 = por %p148, %p149
    %p152 = scmp.ne.s32.totalorder %s137, %s151
    %p153 = scmp.eq.s32.totalorder %s22, 0
    %p154 = por %p152, %p153
    %s156 = sadd.s32 %s155, 1
    %p159 = scmp.eq.s32.totalorder %s16, 1
    %p160 = scmp.ne.s32.totalorder %s155, %s157
    %p161 = scmp.eq.s32.totalorder %s16, 0
    %p162 = por %p160, %p161
    %p163 = scmp.ne.s32.totalorder %s155, %s157
    %p164 = scmp.eq.s32.totalorder %s21, 1
    %p165 = por %p163, %p164
    %p166 = scmp.ne.s32.totalorder %s157, %s158
    %p167 = scmp.eq.s32.totalorder %s21, 0
    %p168 = por %p166, %p167
    %p169 = scmp.ne.s32.totalorder %s157, %s158
    %p170 = scmp.eq.s32.totalorder %s22, 1
    %p171 = por %p169, %p170
    %p173 = scmp.ne.s32.totalorder %s158, %s172
    %p174 = scmp.eq.s32.totalorder %s22, 0
    %p175 = por %p173, %p174
    %s177 = sadd.s32 %s176, 1
    %p180 = scmp.eq.s32.totalorder %s16, 1
    %p181 = scmp.ne.s32.totalorder %s176, %s178
    %p182 = scmp.eq.s32.totalorder %s16, 0
    %p183 = por %p181, %p182
    %p184 = scmp.ne.s32.totalorder %s176, %s178
    %p185 = scmp.eq.s32.totalorder %s21, 1
    %p186 = por %p184, %p185
    %p187 = scmp.ne.s32.totalorder %s178, %s179
    %p188 = scmp.eq.s32.totalorder %s21, 0
    %p189 = por %p187, %p188
    %p190 = scmp.ne.s32.totalorder %s178, %s179
    %p191 = scmp.eq.s32.totalorder %s22, 1
    %p192 = por %p190, %p191
    %p194 = scmp.ne.s32.totalorder %s179, %s193
    %p195 = scmp.eq.s32.totalorder %s22, 0
    %p196 = por %p194, %p195
    %s198 = sadd.s32 %s197, 1
    %p201 = scmp.eq.s32.totalorder %s16, 1
    %p202 = scmp.ne.s32.totalorder %s197, %s199
    %p203 = scmp.eq.s32.totalorder %s16, 0
    %p204 = por %p202, %p203
    %p205 = scmp.ne.s32.totalorder %s197, %s199
    %p206 = scmp.eq.s32.totalorder %s21, 1
    %p207 = por %p205, %p206
    %p208 = scmp.ne.s32.totalorder %s199, %s200
    %p209 = scmp.eq.s32.totalorder %s21, 0
    %p210 = por %p208, %p209
    %p211 = scmp.ne.s32.totalorder %s199, %s200
    %p212 = scmp.eq.s32.totalorder %s22, 1
    %p213 = por %p211, %p212
    %p215 = scmp.ne.s32.totalorder %s200, %s214
    %p216 = scmp.eq.s32.totalorder %s22, 0
    %p217 = por %p215, %p216
    %s219 = sadd.s32 %s218, 1
    %p222 = scmp.eq.s32.totalorder %s16, 1
    %p223 = scmp.ne.s32.totalorder %s218, %s220
    %p224 = scmp.eq.s32.totalorder %s16, 0
    %p225 = por %p223, %p224
    %p226 = scmp.ne.s32.totalorder %s218, %s220
    %p227 = scmp.eq.s32.totalorder %s21, 1
    %p228 = por %p226, %p227
    %p229 = scmp.ne.s32.totalorder %s220, %s221
    %p230 = scmp.eq.s32.totalorder %s21, 0
    %p231 = por %p229, %p230
    %p232 = scmp.ne.s32.totalorder %s220, %s221
    %p233 = scmp.eq.s32.totalorder %s22, 1
    %p234 = por %p232, %p233
    %p236 = scmp.ne.s32.totalorder %s221, %s235
    %p237 = scmp.eq.s32.totalorder %s22, 0
    %p238 = por %p236, %p237
    %s240 = sadd.s32 %s239, 1
    %p243 = scmp.eq.s32.totalorder %s16, 1
    %p244 = scmp.ne.s32.totalorder %s239, %s241
    %p245 = scmp.eq.s32.totalorder %s16, 0
    %p246 = por %p244, %p245
    %p247 = scmp.ne.s32.totalorder %s239, %s241
    %p248 = scmp.eq.s32.totalorder %s21, 1
    %p249 = por %p247, %p248
    %p250 = scmp.ne.s32.totalorder %s241, %s242
    %p251 = scmp.eq.s32.totalorder %s21, 0
    %p252 = por %p250, %p251
    %p253 = scmp.ne.s32.totalorder %s241, %s242
    %p254 = scmp.eq.s32.totalorder %s22, 1
    %p255 = por %p253, %p254
    %p257 = scmp.ne.s32.totalorder %s242, %s256
    %p258 = scmp.eq.s32.totalorder %s22, 0
    %p259 = por %p257, %p258
    %s260 = ssub.s32 %s23, %s35
    %s261 = ssub.s32 %s24, %s31
    %s262 = sor.u32 %s260, %s261
    %p263 = scmp.eq.s32.totalorder %s262, 0
    %s265 = sadd.s32 %s264, 1
    %s266 = scalar_select %p263, %s264, %s265
    %p269 = pneg %p263
    %p270 = scmp.eq.s32.totalorder %s16, 1
    %p271 = por %p269, %p270
    %p272 = scmp.ne.s32.totalorder %s264, %s267
    %p273 = scmp.eq.s32.totalorder %s16, 0
    %p274 = por %p272, %p273
    %p275 = scmp.ne.s32.totalorder %s264, %s267
    %p276 = scmp.eq.s32.totalorder %s21, 1
    %p277 = por %p275, %p276
    %p278 = scmp.ne.s32.totalorder %s267, %s268
    %p279 = scmp.eq.s32.totalorder %s21, 0
    %p280 = por %p278, %p279
    %p281 = scmp.ne.s32.totalorder %s267, %s268
    %p282 = scmp.eq.s32.totalorder %s22, 1
    %p283 = por %p281, %p282
    %p285 = scmp.ne.s32.totalorder %s268, %s284
    %p286 = scmp.eq.s32.totalorder %s22, 0
    %p287 = por %p285, %p286
    %p288 = scmp.le.s32.totalorder 1, %s16
    %p289 = scmp.lt.s32.totalorder %s16, 3
    %p290 = pnand %p288, %p289
    %p291 = pneg %p290
    // Predicated region
    $region9: #{onnx_style_network_forward.1} parent=5 // pred_check
      _
    $region10: #{onnx_style_network_forward.1} parent=5 // pred_check_branch
      %293 = sbr.rel (%p290) target = $region12
    $region11: #{onnx_style_network_forward.1} parent=5 // pred_region
      %s294 = ssub.s32 %s16, 1
      // Predicated region
      $region13: #{onnx_style_network_forward.1} parent=11 // pred_check
        %p295 = pneg %p105
      $region14: #{onnx_style_network_forward.1} parent=11 // pred_check_branch
        %297 = sbr.rel (%p295) target = $region16
      $region15: #{onnx_style_network_forward.1} parent=11 // pred_region
        _
      $region16: #{onnx_style_network_forward.1} parent=11 // pred_fallthru
        _
      // Predicated region
      $region17: #{onnx_style_network_forward.1} parent=11 // pred_check
        %p298 = pneg %p126
      $region18: #{onnx_style_network_forward.1} parent=11 // pred_check_branch
        %300 = sbr.rel (%p298) target = $region20
      $region19: #{onnx_style_network_forward.1} parent=11 // pred_region
        _
      $region20: #{onnx_style_network_forward.1} parent=11 // pred_fallthru
        _
      // Predicated region
      $region21: #{onnx_style_network_forward.1} parent=11 // pred_check
        %p301 = pneg %p147
      $region22: #{onnx_style_network_forward.1} parent=11 // pred_check_branch
        %303 = sbr.rel (%p301) target = $region24
      $region23: #{onnx_style_network_forward.1} parent=11 // pred_region
        _
      $region24: #{onnx_style_network_forward.1} parent=11 // pred_fallthru
        _
      // Predicated region
      $region25: #{onnx_style_network_forward.1} parent=11 // pred_check
        %p304 = pneg %p168
      $region26: #{onnx_style_network_forward.1} parent=11 // pred_check_branch
        %306 = sbr.rel (%p304) target = $region28
      $region27: #{onnx_style_network_forward.1} parent=11 // pred_region
        _
      $region28: #{onnx_style_network_forward.1} parent=11 // pred_fallthru
        _
      // Predicated region
      $region29: #{onnx_style_network_forward.1} parent=11 // pred_check
        %p307 = pneg %p189
      $region30: #{onnx_style_network_forward.1} parent=11 // pred_check_branch
        %309 = sbr.rel (%p307) target = $region32
      $region31: #{onnx_style_network_forward.1} parent=11 // pred_region
        _
      $region32: #{onnx_style_network_forward.1} parent=11 // pred_fallthru
        _
      // Predicated region
      $region33: #{onnx_style_network_forward.1} parent=11 // pred_check
        %p310 = pneg %p210
      $region34: #{onnx_style_network_forward.1} parent=11 // pred_check_branch
        %312 = sbr.rel (%p310) target = $region36
      $region35: #{onnx_style_network_forward.1} parent=11 // pred_region
        _
      $region36: #{onnx_style_network_forward.1} parent=11 // pred_fallthru
        _
      // Predicated region
      $region37: #{onnx_style_network_forward.1} parent=11 // pred_check
        %p313 = pneg %p231
      $region38: #{onnx_style_network_forward.1} parent=11 // pred_check_branch
        %315 = sbr.rel (%p313) target = $region40
      $region39: #{onnx_style_network_forward.1} parent=11 // pred_region
        _
      $region40: #{onnx_style_network_forward.1} parent=11 // pred_fallthru
        _
      // Predicated region
      $region41: #{onnx_style_network_forward.1} parent=11 // pred_check
        %p316 = pneg %p252
      $region42: #{onnx_style_network_forward.1} parent=11 // pred_check_branch
        %318 = sbr.rel (%p316) target = $region44
      $region43: #{onnx_style_network_forward.1} parent=11 // pred_region
        _
      $region44: #{onnx_style_network_forward.1} parent=11 // pred_fallthru
        _
    $region12: #{onnx_style_network_forward.1} parent=5 // pred_fallthru
      _
    %p319 = scmp.lt.s32.totalorder %s16, 2
    // Predicated region
    $region45: #{onnx_style_network_forward.1} parent=5 // pred_check
      %p320 = pneg %p319
    $region46: #{onnx_style_network_forward.1} parent=5 // pred_check_branch
      %322 = sbr.rel (%p320) target = $region48
    $region47: #{onnx_style_network_forward.1} parent=5 // pred_region
      // Predicated region
      $region49: #{onnx_style_network_forward.1} parent=47 // pred_check
        %p323 = pneg %p50
      $region50: #{onnx_style_network_forward.1} parent=47 // pred_check_branch
        %325 = sbr.rel (%p323) target = $region52
      $region51: #{onnx_style_network_forward.1} parent=47 // pred_region
        %s326 = smul.u32 2, %s24
        %p327 = scmp.lt.s32.totalorder %s23, 1
        %s328 = scalar_select %p327, %s23, 1
        %p329 = scmp.lt.s32.totalorder %s326, 1
        %s330 = scalar_select %p329, %s326, 1
        %s331 = smul.addr %s328, 2
        %s332 = sadd.s32 %s330, %s331
        %s333 = smul.addr %s332, 8
        %s334 = scalar_lea.vmem %s0, %s333
        %s335 = smul.u32 2, %s24
      $region52: #{onnx_style_network_forward.1} parent=47 // pred_fallthru
        _
      // Predicated region
      $region53: #{onnx_style_network_forward.1} parent=47 // pred_check
        %p336 = pneg %p78
      $region54: #{onnx_style_network_forward.1} parent=47 // pred_check_branch
        %338 = sbr.rel (%p336) target = $region56
      $region55: #{onnx_style_network_forward.1} parent=47 // pred_region
        %s339 = smul.u32 2, %s24
        %p340 = scmp.lt.s32.totalorder %s23, 1
        %s341 = scalar_select %p340, %s23, 1
        %p342 = scmp.lt.s32.totalorder %s339, 1
        %s343 = scalar_select %p342, %s339, 1
        %s344 = smul.addr %s341, 2
        %s345 = sadd.s32 %s343, %s344
        %s346 = smul.addr %s345, 8
        %s347 = scalar_lea.vmem %s1, %s346
        %s348 = smul.u32 2, %s24
      $region56: #{onnx_style_network_forward.1} parent=47 // pred_fallthru
        _
    $region48: #{onnx_style_network_forward.1} parent=5 // pred_fallthru
      _
    %p349 = scmp.le.s32.totalorder 1, %s16
    %p350 = scmp.lt.s32.totalorder %s16, 3
    %p351 = pnand %p349, %p350
    %p352 = pneg %p351
    // Predicated region
    $region57: #{onnx_style_network_forward.1} parent=5 // pred_check
      _
    $region58: #{onnx_style_network_forward.1} parent=5 // pred_check_branch
      %354 = sbr.rel (%p351) target = $region60
    $region59: #{onnx_style_network_forward.1} parent=5 // pred_region
      %s355 = ssub.s32 %s16, 1
      %s356 = smul.u32 2, %s26
      %p357 = scmp.lt.s32.totalorder %s25, 1
      %s358 = scalar_select %p357, %s25, 1
      %p359 = scmp.lt.s32.totalorder %s356, 1
      %s360 = scalar_select %p359, %s356, 1
      %s361 = smul.addr %s358, 2
      %s362 = sadd.s32 %s360, %s361
      %s363 = smul.addr %s362, 8
      %s364 = scalar_lea.vmem %s0, %s363
      %p365 = pneg %p56
      %p366 = pneg %p53
      %s367 = smul.u32 2, %s26
      %p368 = scmp.lt.s32.totalorder %s25, 1
      %s369 = scalar_select %p368, %s25, 1
      %p370 = scmp.lt.s32.totalorder %s367, 1
      %s371 = scalar_select %p370, %s367, 1
      %s372 = smul.addr %s369, 2
      %s373 = sadd.s32 %s371, %s372
      %s374 = smul.addr %s373, 8
      %s375 = scalar_lea.vmem %s1, %s374
      %p376 = pneg %p84
      %p377 = pneg %p81
      %p378 = pneg %p105
      %p379 = pneg %p102
      %p380 = pneg %p126
      %p381 = pneg %p123
      %p382 = pneg %p147
      %p383 = pneg %p144
      %p384 = pneg %p168
      %p385 = pneg %p165
      %p386 = pneg %p189
      %p387 = pneg %p186
      %p388 = pneg %p210
      %p389 = pneg %p207
      %p390 = pneg %p231
      %p391 = pneg %p228
      %p392 = pneg %p252
      %p393 = pneg %p249
      %p394 = pneg %p280
      %p395 = pneg %p277
      %s396 = smul.u32 2, %s26
      %p397 = scmp.lt.s32.totalorder %s25, 1
      %s398 = scalar_select %p397, %s25, 1
      %p399 = scmp.lt.s32.totalorder %s396, 1
      %s400 = scalar_select %p399, %s396, 1
      %s401 = smul.addr %s398, 6
      %s402 = sadd.s32 %s400, %s401
      %s403 = smul.addr %s402, 8
      %s404 = scalar_lea.vmem %s10, %s403
      %s405 = smul.u32 2, %s26
      %p406 = scmp.lt.s32.totalorder %s25, 1
      %s407 = scalar_select %p406, %s25, 1
      %p408 = scmp.lt.s32.totalorder %s405, 1
      %s409 = scalar_select %p408, %s405, 1
      %s410 = smul.addr %s407, 2
      %s411 = sadd.s32 %s409, %s410
      %s412 = smul.addr %s411, 8
      %s413 = scalar_lea.vmem %s0, %s412
      %s414 = smul.u32 2, %s26
      %s415 = smul.u32 2, %s26
      %p416 = scmp.lt.s32.totalorder %s25, 1
      %s417 = scalar_select %p416, %s25, 1
      %p418 = scmp.lt.s32.totalorder %s415, 1
      %s419 = scalar_select %p418, %s415, 1
      %s420 = smul.addr %s417, 2
      %s421 = sadd.s32 %s419, %s420
      %s422 = smul.addr %s421, 8
      %s423 = scalar_lea.vmem %s1, %s422
      %s424 = smul.u32 2, %s26
      %s425 = smul.u32 2, %s26
      %p426 = scmp.lt.s32.totalorder %s25, 1
      %s427 = scalar_select %p426, %s25, 1
      %p428 = scmp.lt.s32.totalorder %s425, 1
      %s429 = scalar_select %p428, %s425, 1
      %s430 = smul.addr %s427, 6
      %s431 = sadd.s32 %s429, %s430
      %s432 = smul.addr %s431, 8
      %s433 = scalar_lea.vmem %s10, %s432
      %s434 = smul.u32 2, %s26
      %v435 = vld [vmem:[%s413] sm:$0xff]
      %v436 = vld [vmem:[%s413 + $0x8] sm:$0xff]
      %v437 = vld [vmem:[%s423] sm:$0xff]
      %v438 = vld [vmem:[%s423 + $0x8] sm:$0xff]
      %v439 = vld [vmem:[%s2] sm:$0xff]
      %v440 = vld [vmem:[%s2 + $0x8] sm:$0xff]
      %v441 = vld [vmem:[%s2 + $0x10] sm:$0xff]
      %v442 = vld [vmem:[%s2 + $0x18] sm:$0xff]
      %v443 = vld [vmem:[%s2 + $0x20] sm:$0x1]
      %v444 = vld [vmem:[%s3] sm:$0xff]
      %v445 = vld [vmem:[%s3 + $0x8] sm:$0xff]
      %v446 = vld [vmem:[%s3 + $0x10] sm:$0xff]
      %v447 = vld [vmem:[%s3 + $0x18] sm:$0xff]
      %v448 = vld [vmem:[%s3 + $0x20] sm:$0x1]
      %450 = vset.pattern.permute.xlu0 0
      %451 = vperm.xlu0 %450, %v444
      %v452 = vpop.permute.xlu0 %451
      %455 = vset.pattern.permute.xlu0 0
      %456 = vperm.xlu0 %455, %v445
      %v457 = vpop.permute.xlu0 %456
      %460 = vset.pattern.permute.xlu0 0
      %461 = vperm.xlu0 %460, %v446
      %v462 = vpop.permute.xlu0 %461
      %465 = vset.pattern.permute.xlu0 0
      %466 = vperm.xlu0 %465, %v447
      %v467 = vpop.permute.xlu0 %466
      %470 = vset.pattern.permute.xlu0 0
      %471 = vperm.xlu0 %470, %v448
      %v472 = vpop.permute.xlu0 %471
      %vm474 = vcmask 64512
      %v476 = vsel %vm474, %v439, 0
      %v479 = vsel %vm474, %v440, 0
      %v482 = vsel %vm474, %v441, 0
      %v485 = vsel %vm474, %v442, 0
      %v488 = vsel %vm474, %v443, 0
      %490 = vmatpush.msra.mxu0 0.0
      %491 = vmatpush.msra.mxu0 0.0
      %492 = vmatpush.msra.mxu0 0.0
      %493 = vmatpush.msra.mxu0 0.0
      %494 = vmatpush.msra.mxu0 0.0
      %495 = vmatpush.msra.mxu0 0.0
      %496 = vmatpush.msra.mxu0 0.0
      %497 = vmatpush.msra.mxu0 0.0
      %498 = vmatpush.msra.mxu0 0.0
      %499 = vmatpush.msra.mxu0 0.0
      %500 = vmatpush.msra.mxu0 0.0
      %501 = vmatpush.msra.mxu0 0.0
      %502 = vmatpush.msra.mxu0 0.0
      %503 = vmatpush.msra.mxu0 0.0
      %504 = vmatpush.msra.mxu0 0.0
      %505 = vmatpush.msra.mxu0 %v435
      %506 = vmatmul.f32.gmra.mxu0 %v476
      %v507 = vpop.f32.mrf.mxu0
      %v508 = vadd.f32 %v452, %v507
      %509 = vmatmul.f32.gmra.mxu0 %v479
      %v510 = vpop.f32.mrf.mxu0
      %v511 = vadd.f32 %v457, %v510
      %512 = vmatmul.f32.gmra.mxu0 %v482
      %v513 = vpop.f32.mrf.mxu0
      %v514 = vadd.f32 %v462, %v513
      %515 = vmatmul.f32.gmra.mxu0 %v485
      %v516 = vpop.f32.mrf.mxu0
      %v517 = vadd.f32 %v467, %v516
      %518 = vmatmul.f32.gmra.mxu0 %v488
      %v519 = vpop.f32.mrf.mxu0
      %v520 = vadd.f32 %v472, %v519
      %521 = vdwg.mxu0
      %522 = vmatpush.msra.mxu0 0.0
      %523 = vmatpush.msra.mxu0 0.0
      %524 = vmatpush.msra.mxu0 0.0
      %525 = vmatpush.msra.mxu0 0.0
      %526 = vmatpush.msra.mxu0 0.0
      %527 = vmatpush.msra.mxu0 0.0
      %528 = vmatpush.msra.mxu0 0.0
      %529 = vmatpush.msra.mxu0 0.0
      %530 = vmatpush.msra.mxu0 0.0
      %531 = vmatpush.msra.mxu0 0.0
      %532 = vmatpush.msra.mxu0 0.0
      %533 = vmatpush.msra.mxu0 0.0
      %534 = vmatpush.msra.mxu0 0.0
      %535 = vmatpush.msra.mxu0 0.0
      %536 = vmatpush.msra.mxu0 0.0
      %537 = vmatpush.msra.mxu0 %v436
      %538 = vmatmul.f32.gmra.mxu0 %v476
      %v539 = vpop.f32.mrf.mxu0
      %v540 = vadd.f32 %v452, %v539
      %541 = vmatmul.f32.gmra.mxu0 %v479
      %v542 = vpop.f32.mrf.mxu0
      %v543 = vadd.f32 %v457, %v542
      %544 = vmatmul.f32.gmra.mxu0 %v482
      %v545 = vpop.f32.mrf.mxu0
      %v546 = vadd.f32 %v462, %v545
      %547 = vmatmul.f32.gmra.mxu0 %v485
      %v548 = vpop.f32.mrf.mxu0
      %v549 = vadd.f32 %v467, %v548
      %550 = vmatmul.f32.gmra.mxu0 %v488
      %v551 = vpop.f32.mrf.mxu0
      %v552 = vadd.f32 %v472, %v551
      %553 = vdwg.mxu0
      %v554 = vld [vmem:[%s4] sm:$0xff]
      %v555 = vld [vmem:[%s4 + $0x8] sm:$0xff]
      %v556 = vld [vmem:[%s4 + $0x10] sm:$0xff]
      %v557 = vld [vmem:[%s4 + $0x18] sm:$0xff]
      %v558 = vld [vmem:[%s4 + $0x20] sm:$0x1]
      %v559 = vld [vmem:[%s5] sm:$0xff]
      %v560 = vld [vmem:[%s5 + $0x8] sm:$0xff]
      %v561 = vld [vmem:[%s5 + $0x10] sm:$0xff]
      %v562 = vld [vmem:[%s5 + $0x18] sm:$0xff]
      %v563 = vld [vmem:[%s5 + $0x20] sm:$0x1]
      %565 = vset.pattern.permute.xlu0 0
      %566 = vperm.xlu0 %565, %v559
      %v567 = vpop.permute.xlu0 %566
      %570 = vset.pattern.permute.xlu0 0
      %571 = vperm.xlu0 %570, %v560
      %v572 = vpop.permute.xlu0 %571
      %575 = vset.pattern.permute.xlu0 0
      %576 = vperm.xlu0 %575, %v561
      %v577 = vpop.permute.xlu0 %576
      %580 = vset.pattern.permute.xlu0 0
      %581 = vperm.xlu0 %580, %v562
      %v582 = vpop.permute.xlu0 %581
      %585 = vset.pattern.permute.xlu0 0
      %586 = vperm.xlu0 %585, %v563
      %v587 = vpop.permute.xlu0 %586
      %v590 = vsel %vm474, %v554, 0
      %v593 = vsel %vm474, %v555, 0
      %v596 = vsel %vm474, %v556, 0
      %v599 = vsel %vm474, %v557, 0
      %v602 = vsel %vm474, %v558, 0
      %604 = vmatpush.msra.mxu0 0.0
      %605 = vmatpush.msra.mxu0 0.0
      %606 = vmatpush.msra.mxu0 0.0
      %607 = vmatpush.msra.mxu0 0.0
      %608 = vmatpush.msra.mxu0 0.0
      %609 = vmatpush.msra.mxu0 0.0
      %610 = vmatpush.msra.mxu0 0.0
      %611 = vmatpush.msra.mxu0 0.0
      %612 = vmatpush.msra.mxu0 0.0
      %613 = vmatpush.msra.mxu0 0.0
      %614 = vmatpush.msra.mxu0 0.0
      %615 = vmatpush.msra.mxu0 0.0
      %616 = vmatpush.msra.mxu0 0.0
      %617 = vmatpush.msra.mxu0 0.0
      %618 = vmatpush.msra.mxu0 0.0
      %619 = vmatpush.msra.mxu0 %v437
      %620 = vmatmul.f32.gmra.mxu0 %v590
      %v621 = vpop.f32.mrf.mxu0
      %v622 = vadd.f32 %v567, %v621
      %623 = vmatmul.f32.gmra.mxu0 %v593
      %v624 = vpop.f32.mrf.mxu0
      %v625 = vadd.f32 %v572, %v624
      %626 = vmatmul.f32.gmra.mxu0 %v596
      %v627 = vpop.f32.mrf.mxu0
      %v628 = vadd.f32 %v577, %v627
      %629 = vmatmul.f32.gmra.mxu0 %v599
      %v630 = vpop.f32.mrf.mxu0
      %v631 = vadd.f32 %v582, %v630
      %632 = vmatmul.f32.gmra.mxu0 %v602
      %v633 = vpop.f32.mrf.mxu0
      %v634 = vadd.f32 %v587, %v633
      %635 = vdwg.mxu0
      %636 = vmatpush.msra.mxu0 0.0
      %637 = vmatpush.msra.mxu0 0.0
      %638 = vmatpush.msra.mxu0 0.0
      %639 = vmatpush.msra.mxu0 0.0
      %640 = vmatpush.msra.mxu0 0.0
      %641 = vmatpush.msra.mxu0 0.0
      %642 = vmatpush.msra.mxu0 0.0
      %643 = vmatpush.msra.mxu0 0.0
      %644 = vmatpush.msra.mxu0 0.0
      %645 = vmatpush.msra.mxu0 0.0
      %646 = vmatpush.msra.mxu0 0.0
      %647 = vmatpush.msra.mxu0 0.0
      %648 = vmatpush.msra.mxu0 0.0
      %649 = vmatpush.msra.mxu0 0.0
      %650 = vmatpush.msra.mxu0 0.0
      %651 = vmatpush.msra.mxu0 %v438
      %652 = vmatmul.f32.gmra.mxu0 %v590
      %v653 = vpop.f32.mrf.mxu0
      %v654 = vadd.f32 %v567, %v653
      %655 = vmatmul.f32.gmra.mxu0 %v593
      %v656 = vpop.f32.mrf.mxu0
      %v657 = vadd.f32 %v572, %v656
      %658 = vmatmul.f32.gmra.mxu0 %v596
      %v659 = vpop.f32.mrf.mxu0
      %v660 = vadd.f32 %v577, %v659
      %661 = vmatmul.f32.gmra.mxu0 %v599
      %v662 = vpop.f32.mrf.mxu0
      %v663 = vadd.f32 %v582, %v662
      %664 = vmatmul.f32.gmra.mxu0 %v602
      %v665 = vpop.f32.mrf.mxu0
      %v666 = vadd.f32 %v587, %v665
      %667 = vdwg.mxu0
      %v668 = vmax.f32 %v508, 0.0
      %v669 = vmax.f32 %v540, 0.0
      %v670 = vmax.f32 %v511, 0.0
      %v671 = vmax.f32 %v543, 0.0
      %v672 = vmax.f32 %v514, 0.0
      %v673 = vmax.f32 %v546, 0.0
      %v674 = vmax.f32 %v517, 0.0
      %v675 = vmax.f32 %v549, 0.0
      %v676 = vmax.f32 %v622, 0.0
      %v677 = vmax.f32 %v654, 0.0
      %v678 = vmax.f32 %v625, 0.0
      %v679 = vmax.f32 %v657, 0.0
      %v680 = vmax.f32 %v628, 0.0
      %v681 = vmax.f32 %v660, 0.0
      %v682 = vmax.f32 %v631, 0.0
      %v683 = vmax.f32 %v663, 0.0
      %v684 = vld [vmem:[%s6] sm:$0xff]
      %v685 = vld [vmem:[%s6 + $0x8] sm:$0xff]
      %v686 = vld [vmem:[%s7] sm:$0xff]
      %v687 = vld [vmem:[%s7 + $0x8] sm:$0xff]
      %689 = vset.pattern.permute.xlu0 0
      %690 = vperm.xlu0 %689, %v686
      %v691 = vpop.permute.xlu0 %690
      %694 = vset.pattern.permute.xlu0 0
      %695 = vperm.xlu0 %694, %v687
      %v696 = vpop.permute.xlu0 %695
      %vm698 = vcmask 261120
      %v700 = vsel %vm698, %v684, 0
      %v703 = vsel %vm698, %v685, 0
      %705 = vmatpush.msra.mxu0 0.0
      %706 = vmatpush.msra.mxu0 0.0
      %707 = vmatpush.msra.mxu0 0.0
      %708 = vmatpush.msra.mxu0 0.0
      %709 = vmatpush.msra.mxu0 0.0
      %710 = vmatpush.msra.mxu0 0.0
      %711 = vmatpush.msra.mxu0 0.0
      %712 = vmatpush.msra.mxu0 0.0
      %713 = vmatpush.msra.mxu0 0.0
      %714 = vmatpush.msra.mxu0 0.0
      %715 = vmatpush.msra.mxu0 0.0
      %716 = vmatpush.msra.mxu0 0.0
      %717 = vmatpush.msra.mxu0 %v674
      %718 = vmatpush.msra.mxu0 %v672
      %719 = vmatpush.msra.mxu0 %v670
      %720 = vmatpush.msra.mxu0 %v668
      %721 = vmatmul.f32.gmra.mxu0 %v700
      %v722 = vpop.f32.mrf.mxu0
      %v723 = vadd.f32 %v691, %v722
      %724 = vmatmul.f32.gmra.mxu0 %v703
      %v725 = vpop.f32.mrf.mxu0
      %v726 = vadd.f32 %v696, %v725
      %727 = vdwg.mxu0
      %728 = vmatpush.msra.mxu0 0.0
      %729 = vmatpush.msra.mxu0 0.0
      %730 = vmatpush.msra.mxu0 0.0
      %731 = vmatpush.msra.mxu0 0.0
      %732 = vmatpush.msra.mxu0 0.0
      %733 = vmatpush.msra.mxu0 0.0
      %734 = vmatpush.msra.mxu0 0.0
      %735 = vmatpush.msra.mxu0 0.0
      %736 = vmatpush.msra.mxu0 0.0
      %737 = vmatpush.msra.mxu0 0.0
      %738 = vmatpush.msra.mxu0 0.0
      %739 = vmatpush.msra.mxu0 0.0
      %740 = vmatpush.msra.mxu0 %v675
      %741 = vmatpush.msra.mxu0 %v673
      %742 = vmatpush.msra.mxu0 %v671
      %743 = vmatpush.msra.mxu0 %v669
      %744 = vmatmul.f32.gmra.mxu0 %v700
      %v745 = vpop.f32.mrf.mxu0
      %v746 = vadd.f32 %v691, %v745
      %747 = vmatmul.f32.gmra.mxu0 %v703
      %v748 = vpop.f32.mrf.mxu0
      %v749 = vadd.f32 %v696, %v748
      %750 = vdwg.mxu0
      %v751 = vld [vmem:[%s8] sm:$0x7f]
      %v752 = vld [vmem:[%s9] sm:$0x7f]
      %754 = vset.pattern.permute.xlu0 0
      %755 = vperm.xlu0 %754, %v752
      %v756 = vpop.permute.xlu0 %755
      %v759 = vsel %vm698, %v751, 0
      %761 = vmatpush.msra.mxu0 0.0
      %762 = vmatpush.msra.mxu0 0.0
      %763 = vmatpush.msra.mxu0 0.0
      %764 = vmatpush.msra.mxu0 0.0
      %765 = vmatpush.msra.mxu0 0.0
      %766 = vmatpush.msra.mxu0 0.0
      %767 = vmatpush.msra.mxu0 0.0
      %768 = vmatpush.msra.mxu0 0.0
      %769 = vmatpush.msra.mxu0 0.0
      %770 = vmatpush.msra.mxu0 0.0
      %771 = vmatpush.msra.mxu0 0.0
      %772 = vmatpush.msra.mxu0 0.0
      %773 = vmatpush.msra.mxu0 %v682
      %774 = vmatpush.msra.mxu0 %v680
      %775 = vmatpush.msra.mxu0 %v678
      %776 = vmatpush.msra.mxu0 %v676
      %777 = vmatmul.f32.gmra.mxu0 %v759
      %v778 = vpop.f32.mrf.mxu0
      %v779 = vadd.f32 %v756, %v778
      %780 = vdwg.mxu0
      %781 = vmatpush.msra.mxu0 0.0
      %782 = vmatpush.msra.mxu0 0.0
      %783 = vmatpush.msra.mxu0 0.0
      %784 = vmatpush.msra.mxu0 0.0
      %785 = vmatpush.msra.mxu0 0.0
      %786 = vmatpush.msra.mxu0 0.0
      %787 = vmatpush.msra.mxu0 0.0
      %788 = vmatpush.msra.mxu0 0.0
      %789 = vmatpush.msra.mxu0 0.0
      %790 = vmatpush.msra.mxu0 0.0
      %791 = vmatpush.msra.mxu0 0.0
      %792 = vmatpush.msra.mxu0 0.0
      %793 = vmatpush.msra.mxu0 %v683
      %794 = vmatpush.msra.mxu0 %v681
      %795 = vmatpush.msra.mxu0 %v679
      %796 = vmatpush.msra.mxu0 %v677
      %797 = vmatmul.f32.gmra.mxu0 %v759
      %v798 = vpop.f32.mrf.mxu0
      %v799 = vadd.f32 %v756, %v798
      %800 = vdwg.mxu0
      %801 = vst [vmem:[%s433] sm:$0xff] %v723
      %802 = vst [vmem:[%s433 + $0x8] sm:$0xff] %v746
      %803 = vst [vmem:[%s433 + $0x10] sm:$0x7f] %v726
      %804 = vst [vmem:[%s433 + $0x18] sm:$0x7f] %v749
      %v807 = vrot.slane %v779, 1
      %v808 = vrot.slane %v799, 1
      %811 = vst [vmem:[%s433 + $0x10] sm:$0x80] %v807
      %812 = vst [vmem:[%s433 + $0x18] sm:$0x80] %v808
      %813 = vst [vmem:[%s433 + $0x20] sm:$0x1f] %v807
      %814 = vst [vmem:[%s433 + $0x28] sm:$0x1f] %v808
      %v817 = vrot.slane %v552, 7
      %vm818 = vcmask 1040384
      %v819 = vsel %vm818, %v520, %v817
      %v821 = vlaneseq
      %vm822 = vcmp.ge.s32.totalorder %v821, 0
      %vm823 = vcmp.lt.s32.totalorder %v821, 256
      %vm824 = vmand %vm822, %vm823
      %s825 = scalar_lea.vmem %s433, 37
      %826 = vst.msk [vmem:[%s825] ss:$8 sm:$0x3] %vm824, %v819
      %827 = vst.msk [vmem:[%s825] ss:$8 sm:$0x0] %vm824, %v819
      %v830 = vrot.slane %v666, 7
      %v831 = vsel %vm818, %v634, %v830
      %s833 = scalar_lea.vmem %s433, 38
      %834 = vst.msk [vmem:[%s833] ss:$8 sm:$0x3] %vm824, %v831
      %835 = vst.msk [vmem:[%s833] ss:$8 sm:$0x0] %vm824, %v831
      %v836 = vrot.slane %v779, 7
      %v837 = vrot.slane %v799, 7
      %v840 = vadd.f32 %v726, %v836
      %v841 = vadd.f32 %v749, %v837
      %844 = vst [vmem:[#allocation1] sm:$0xff] %v840
      %845 = vst [vmem:[#allocation1 + $0x9] sm:$0xff] %v841
      %s846 = scalar_lea.vmem [#allocation1], 7
      %v847 = vld [vmem:[%s846] ss:$9 sm:$0xff]
      %s849 = scalar_lea.vmem %s433, 39
      %850 = vst.msk [vmem:[%s849] ss:$8 sm:$0x3] %vm824, %v847
      %851 = vst.msk [vmem:[%s849] ss:$8 sm:$0x0] %vm824, %v847
      %s852 = smul.u32 2, %s26
      %p853 = scmp.lt.s32.totalorder %s25, 1
      %s854 = scalar_select %p853, %s25, 1
      %p855 = scmp.lt.s32.totalorder %s852, 1
      %s856 = scalar_select %p855, %s852, 1
      %s857 = smul.addr %s854, 6
      %s858 = sadd.s32 %s856, %s857
      %s859 = smul.addr %s858, 8
      %s860 = scalar_lea.vmem %s10, %s859
      // Predicated region
      $region61: #{onnx_style_network_forward.1} parent=59 // pred_check
        %p861 = pneg %p277
      $region62: #{onnx_style_network_forward.1} parent=59 // pred_check_branch
        %863 = sbr.rel (%p861) target = $region64
      $region63: #{onnx_style_network_forward.1} parent=59 // pred_region
        %s864 = smul.u32 2, %s26
      $region64: #{onnx_style_network_forward.1} parent=59 // pred_fallthru
        _
    $region60: #{onnx_style_network_forward.1} parent=5 // pred_fallthru
      _
    %p865 = scmp.le.s32.totalorder 2, %s16
    // Predicated region
    $region65: #{onnx_style_network_forward.1} parent=5 // pred_check
      %p866 = pneg %p865
    $region66: #{onnx_style_network_forward.1} parent=5 // pred_check_branch
      %868 = sbr.rel (%p866) target = $region68
    $region67: #{onnx_style_network_forward.1} parent=5 // pred_region
      %s869 = ssub.s32 %s16, 2
      // Predicated region
      $region69: #{onnx_style_network_forward.1} parent=67 // pred_check
        %p870 = pneg %p283
      $region70: #{onnx_style_network_forward.1} parent=67 // pred_check_branch
        %872 = sbr.rel (%p870) target = $region72
      $region71: #{onnx_style_network_forward.1} parent=67 // pred_region
        %s873 = smul.u32 2, %s28
        %p874 = scmp.lt.s32.totalorder %s27, 1
        %s875 = scalar_select %p874, %s27, 1
        %p876 = scmp.lt.s32.totalorder %s873, 1
        %s877 = scalar_select %p876, %s873, 1
        %s878 = smul.addr %s875, 6
        %s879 = sadd.s32 %s877, %s878
        %s880 = smul.addr %s879, 8
        %s881 = scalar_lea.vmem %s10, %s880
      $region72: #{onnx_style_network_forward.1} parent=67 // pred_fallthru
        _
    $region68: #{onnx_style_network_forward.1} parent=5 // pred_fallthru
      _
  $region6: #{onnx_style_network_forward.1} parent=0 // loop_footer
    %s20 = sadd.s32 1, %s16
  $region7: #{onnx_style_network_forward.1} parent=0 // loop_footer_branch
    %15 = sbr.rel target = $region3
  $region8: #{onnx_style_network_forward.1} parent=0 // loop_exit
    _

</llo_original>
